<compile_context>
chip_gen: v5e
topology: v5e:2x2
jax: 0.10.0
libtpu: 0.0.40
codegen_flags: <defaults>
</compile_context>

<pallas_src>
import jax
import jax.numpy as jnp
from jax.experimental import pallas as pl
from jax.experimental.pallas import tpu as pltpu


def _round_up(x, m):
    return ((x + m - 1) // m) * m


def critic_kernel(obs_ref, act_ref, w1o_ref, w1a_ref, b1_ref, w2_ref, b2_ref, q_ref):
    # obs_ref: [TB, obs_dim], act_ref: [TB, act_dim]
    # w1o_ref: [obs_dim, H],  w1a_ref: [act_dim, H]
    # b1_ref:  [1, H], w2_ref: [1, H], b2_ref: [1, 1], q_ref: [TB, 1]
    #
    # Layer 1: concat(obs, act) @ W1 computed as a split matmul (MXU, f32 acc).
    h = (
        jnp.dot(obs_ref[...], w1o_ref[...], preferred_element_type=jnp.float32)
        + jnp.dot(act_ref[...], w1a_ref[...], preferred_element_type=jnp.float32)
        + b1_ref[...]
    )
    h = jnp.maximum(h, 0.0)
    # Layer 2 has output width 1: VPU multiply + XLU lane-reduce instead of a
    # 1-wide MXU matmul (avoids MXU push/pop for a single output lane).
    q = jnp.sum(h * w2_ref[...], axis=-1, keepdims=True) + b2_ref[...]
    q_ref[...] = q.astype(q_ref.dtype)


def critic_forward(obs, action, w1, b1, w2, b2, *, batch_tile=1024):
    """Pallas forward for Critic.

    obs:[B,obs_dim], action:[B,act_dim] -> q:[B,1]
    Semantics: q = relu(concat(obs, action) @ w1 + b1) @ w2 + b2
    (nn.Linear weights stored pre-transposed: w1:[repr_dim,hidden], w2:[hidden,1]).
    """
    B, obs_dim = obs.shape
    _, act_dim = action.shape
    hidden = w1.shape[1]
    assert w1.shape[0] == obs_dim + act_dim

    # Split W1 along the input-feature axis: concat(o,a)@W1 == o@W1[:od] + a@W1[od:].
    w1_obs = w1[:obs_dim, :]
    w1_act = w1[obs_dim:, :]
    w2_row = jnp.reshape(w2, (1, hidden))
    b1_row = jnp.reshape(b1, (1, hidden))
    b2_scl = jnp.reshape(b2, (1, 1))

    # Tile selection: big tiles (per-grid-step overhead ~0.35 us), but keep >= 2
    # blocks when the batch allows so both v7x TensorCores get work.
    if B >= 16:
        half = _round_up(pl.cdiv(B, 2), 8)
        tile = _round_up(min(batch_tile, half), 8)
    else:
        tile = B  # tiny batch: one block covering the whole (full-dim) batch

    num_blocks = pl.cdiv(B, tile)
    b_pad = num_blocks * tile
    if b_pad != B:
        pad = b_pad - B
        obs = jnp.pad(obs, ((0, pad), (0, 0)))
        action = jnp.pad(action, ((0, pad), (0, 0)))

    q_padded = pl.pallas_call(
        critic_kernel,
        out_shape=jax.ShapeDtypeStruct((b_pad, 1), obs.dtype),
        grid_spec=pl.GridSpec(
            grid=(num_blocks,),
            in_specs=[
                # Input tiles march down the batch axis.
                pl.BlockSpec((tile, obs_dim), lambda i: (i, 0)),
                pl.BlockSpec((tile, act_dim), lambda i: (i, 0)),
                # Small weights/biases: same full block every step (stay resident).
                pl.BlockSpec((obs_dim, hidden), lambda i: (0, 0)),
                pl.BlockSpec((act_dim, hidden), lambda i: (0, 0)),
                pl.BlockSpec((1, hidden), lambda i: (0, 0)),
                pl.BlockSpec((1, hidden), lambda i: (0, 0)),
                pl.BlockSpec((1, 1), lambda i: (0, 0)),
            ],
            out_specs=pl.BlockSpec((tile, 1), lambda i: (i, 0)),
        ),
        compiler_params=pltpu.CompilerParams(
            dimension_semantics=("parallel",),
        ),
    )(obs, action, w1_obs, w1_act, b1_row, w2_row, b2_scl)

    return q_padded[:B]


def reference_forward(obs, action, w1, b1, w2, b2):
    x = jnp.concatenate([obs, action], axis=1)
    h = jnp.maximum(x @ w1 + b1, 0.0)
    return h @ w2 + b2


if __name__ == "__main__":
    # Small deterministic shapes consistent with the module:
    # repr_dim = obs_dim + action_dim (what the forward pass implies).
    obs_dim = 24
    act_dim = 8
    repr_dim = obs_dim + act_dim  # 32
    hidden_dim = 32

    key = jax.random.PRNGKey(0)
    k_obs, k_act, k_w1, k_b1, k_w2, k_b2 = jax.random.split(key, 6)

    # Deterministic synthetic parameter init (stand-in for utils.weight_init).
    w1 = jax.random.normal(k_w1, (repr_dim, hidden_dim), dtype=jnp.float32) * 0.1
    b1 = jax.random.normal(k_b1, (1, hidden_dim), dtype=jnp.float32) * 0.01
    w2 = jax.random.normal(k_w2, (hidden_dim, 1), dtype=jnp.float32) * 0.1
    b2 = jax.random.normal(k_b2, (1, 1), dtype=jnp.float32) * 0.01

    # Case 1: tiny batch (single full-dim block).
    batch = 8
    obs = jax.random.normal(k_obs, (batch, obs_dim), dtype=jnp.float32)
    action = jax.random.normal(k_act, (batch, act_dim), dtype=jnp.float32)
    q = jax.block_until_ready(critic_forward(obs, action, w1, b1, w2, b2))
    q_ref = reference_forward(obs, action, w1, b1, w2, b2)
    assert q.shape == (batch, 1)
    assert jnp.allclose(q, q_ref, atol=1e-5, rtol=1e-5), "mismatch vs reference (B=8)"

    # Case 2: non-multiple batch exercising tiling + padding path (grid > 1).
    batch2 = 300
    obs2 = jax.random.normal(k_obs, (batch2, obs_dim), dtype=jnp.float32)
    action2 = jax.random.normal(k_act, (batch2, act_dim), dtype=jnp.float32)
    q2 = jax.block_until_ready(
        critic_forward(obs2, action2, w1, b1, w2, b2, batch_tile=128)
    )
    q2_ref = reference_forward(obs2, action2, w1, b1, w2, b2)
    assert q2.shape == (batch2, 1)
    assert jnp.allclose(q2, q2_ref, atol=1e-5, rtol=1e-5), "mismatch vs reference (B=300)"

    print("KERNEL_OK")
</pallas_src>

<mosaic_0001>
module attributes {stable_mosaic.version = 11 : i64} {
  func.func @critic_kernel(%arg0: i32, %arg1: memref<8x24xf32, #tpu.memory_space<vmem>>, %arg2: memref<8x8xf32, #tpu.memory_space<vmem>>, %arg3: memref<24x32xf32, #tpu.memory_space<vmem>>, %arg4: memref<8x32xf32, #tpu.memory_space<vmem>>, %arg5: memref<1x32xf32, #tpu.memory_space<vmem>>, %arg6: memref<1x32xf32, #tpu.memory_space<vmem>>, %arg7: memref<1x1xf32, #tpu.memory_space<vmem>>, %arg8: memref<8x1xf32, #tpu.memory_space<vmem>>) attributes {dimension_semantics = [#tpu.dimension_semantics<parallel>], iteration_bounds = array<i64: 1>, scalar_prefetch = 0 : i64, scratch_operands = 0 : i64, tpu.core_type = #tpu.core_type<tc>, window_params = [{transform_indices = @transform_0, window_bounds = array<i64: 8, 24>}, {transform_indices = @transform_1, window_bounds = array<i64: 8, 8>}, {pipeline_mode = #tpu.pipeline_mode<synchronous>, transform_indices = @transform_2, window_bounds = array<i64: 24, 32>}, {pipeline_mode = #tpu.pipeline_mode<synchronous>, transform_indices = @transform_3, window_bounds = array<i64: 8, 32>}, {pipeline_mode = #tpu.pipeline_mode<synchronous>, transform_indices = @transform_4, window_bounds = array<i64: 1, 32>}, {pipeline_mode = #tpu.pipeline_mode<synchronous>, transform_indices = @transform_5, window_bounds = array<i64: 1, 32>}, {pipeline_mode = #tpu.pipeline_mode<synchronous>, transform_indices = @transform_6, window_bounds = array<i64: 1, 1>}, {transform_indices = @transform_7, window_bounds = array<i64: 8, 1>}]} {
    %c0 = arith.constant 0 : index
    %c0_0 = arith.constant 0 : index
    %0 = vector.load %arg1[%c0, %c0_0] : memref<8x24xf32, #tpu.memory_space<vmem>>, vector<8x24xf32>
    %c0_1 = arith.constant 0 : index
    %c0_2 = arith.constant 0 : index
    %1 = vector.load %arg3[%c0_1, %c0_2] : memref<24x32xf32, #tpu.memory_space<vmem>>, vector<24x32xf32>
    %cst = arith.constant dense<0.000000e+00> : vector<8x32xf32>
    %2 = tpu.matmul %0, %1, %cst {dimension_numbers = #tpu.dot_dimension_numbers<[1], [0], [0], [1], [0, 0, 1, 1], [], []>} : vector<8x24xf32>, vector<24x32xf32>, vector<8x32xf32> -> vector<8x32xf32>
    %c0_3 = arith.constant 0 : index
    %c0_4 = arith.constant 0 : index
    %3 = vector.load %arg2[%c0_3, %c0_4] : memref<8x8xf32, #tpu.memory_space<vmem>>, vector<8x8xf32>
    %c0_5 = arith.constant 0 : index
    %c0_6 = arith.constant 0 : index
    %4 = vector.load %arg4[%c0_5, %c0_6] : memref<8x32xf32, #tpu.memory_space<vmem>>, vector<8x32xf32>
    %cst_7 = arith.constant dense<0.000000e+00> : vector<8x32xf32>
    %5 = tpu.matmul %3, %4, %cst_7 {dimension_numbers = #tpu.dot_dimension_numbers<[1], [0], [0], [1], [0, 0, 1, 1], [], []>} : vector<8x8xf32>, vector<8x32xf32>, vector<8x32xf32> -> vector<8x32xf32>
    %6 = arith.addf %2, %5 : vector<8x32xf32>
    %c0_8 = arith.constant 0 : index
    %c0_9 = arith.constant 0 : index
    %7 = vector.load %arg5[%c0_8, %c0_9] : memref<1x32xf32, #tpu.memory_space<vmem>>, vector<1x32xf32>
    %8 = vector.broadcast %7 : vector<1x32xf32> to vector<8x32xf32>
    %9 = arith.addf %6, %8 : vector<8x32xf32>
    %cst_10 = arith.constant 0.000000e+00 : f32
    %10 = vector.broadcast %cst_10 : f32 to vector<8x32xf32>
    %11 = arith.maximumf %9, %10 : vector<8x32xf32>
    %c0_11 = arith.constant 0 : index
    %c0_12 = arith.constant 0 : index
    %12 = vector.load %arg6[%c0_11, %c0_12] : memref<1x32xf32, #tpu.memory_space<vmem>>, vector<1x32xf32>
    %13 = vector.broadcast %12 : vector<1x32xf32> to vector<8x32xf32>
    %14 = arith.mulf %11, %13 : vector<8x32xf32>
    %cst_13 = arith.constant dense<0.000000e+00> : vector<8xf32>
    %15 = vector.multi_reduction <add>, %14, %cst_13 [1] : vector<8x32xf32> to vector<8xf32>
    %16 = vector.shape_cast %15 : vector<8xf32> to vector<8x1xf32>
    %c0_14 = arith.constant 0 : index
    %c0_15 = arith.constant 0 : index
    %17 = vector.load %arg7[%c0_14, %c0_15] : memref<1x1xf32, #tpu.memory_space<vmem>>, vector<1x1xf32>
    %18 = vector.broadcast %17 : vector<1x1xf32> to vector<8x1xf32>
    %19 = arith.addf %16, %18 : vector<8x1xf32>
    %c0_16 = arith.constant 0 : index
    %c0_17 = arith.constant 0 : index
    %20 = vector.load %arg8[%c0_16, %c0_17] : memref<8x1xf32, #tpu.memory_space<vmem>>, vector<8x1xf32>
    tpu.vector_store %arg8[%c0_16, %c0_17], %19 {strides = array<i32>} : memref<8x1xf32, #tpu.memory_space<vmem>>, vector<8x1xf32>,
    return
  }
  func.func @transform_0(%arg0: i32) -> (i32, i32) {
    %c0_i32 = arith.constant 0 : i32
    %c0_i32_0 = arith.constant 0 : i32
    return %arg0, %c0_i32 : i32, i32
  }
  func.func @transform_1(%arg0: i32) -> (i32, i32) {
    %c0_i32 = arith.constant 0 : i32
    %c0_i32_0 = arith.constant 0 : i32
    return %arg0, %c0_i32 : i32, i32
  }
  func.func @transform_2(%arg0: i32) -> (i32, i32) {
    %c0_i32 = arith.constant 0 : i32
    %c0_i32_0 = arith.constant 0 : i32
    %c0_i32_1 = arith.constant 0 : i32
    return %c0_i32, %c0_i32_0 : i32, i32
  }
  func.func @transform_3(%arg0: i32) -> (i32, i32) {
    %c0_i32 = arith.constant 0 : i32
    %c0_i32_0 = arith.constant 0 : i32
    %c0_i32_1 = arith.constant 0 : i32
    return %c0_i32, %c0_i32_0 : i32, i32
  }
  func.func @transform_4(%arg0: i32) -> (i32, i32) {
    %c0_i32 = arith.constant 0 : i32
    %c0_i32_0 = arith.constant 0 : i32
    %c0_i32_1 = arith.constant 0 : i32
    return %c0_i32, %c0_i32_0 : i32, i32
  }
  func.func @transform_5(%arg0: i32) -> (i32, i32) {
    %c0_i32 = arith.constant 0 : i32
    %c0_i32_0 = arith.constant 0 : i32
    %c0_i32_1 = arith.constant 0 : i32
    return %c0_i32, %c0_i32_0 : i32, i32
  }
  func.func @transform_6(%arg0: i32) -> (i32, i32) {
    %c0_i32 = arith.constant 0 : i32
    %c0_i32_0 = arith.constant 0 : i32
    %c0_i32_1 = arith.constant 0 : i32
    return %c0_i32, %c0_i32_0 : i32, i32
  }
  func.func @transform_7(%arg0: i32) -> (i32, i32) {
    %c0_i32 = arith.constant 0 : i32
    %c0_i32_0 = arith.constant 0 : i32
    return %arg0, %c0_i32 : i32, i32
  }
}

</mosaic_0001>

<llo_original>
// kernel: tpu_custom_call.1
$region0: #{tpu_custom_call.1}
  #allocation0 [shape = 'u32[]', space=smem, size = 0x4, offset = 0x4, fixed_abs, tag = 'smem constant byte address 0x4 - core index']
  #allocation1 [shape = 'u32[72,128]{1,0:T(1,128)}', space=vmem, size = 0x9000, scoped, tag = 'internal scratch']
  #allocation2 [shape = 'f32[1,1]{1,0:T(1,128)S(1)}', space=vmem, size = 0x200, scoped, tag = 'scoped memory for tpu_custom_call.1']
  %s0 = inlined_call_operand.hbm [shape: f32[8,24], index: 0, kind: input, shape index: {}]
  %s1 = inlined_call_operand.hbm [shape: f32[8,8], index: 1, kind: input, shape index: {}]
  %s2 = inlined_call_operand.hbm [shape: f32[24,32], index: 2, kind: input, shape index: {}]
  %s3 = inlined_call_operand.hbm [shape: f32[8,32], index: 3, kind: input, shape index: {}]
  %s4 = inlined_call_operand.vmem [shape: f32[1,32], index: 4, kind: input, shape index: {}]
  %s5 = inlined_call_operand.vmem [shape: f32[1,32], index: 5, kind: input, shape index: {}]
  %s6 = inlined_call_operand.<no memory space> [shape: f32[1,1], index: 6, kind: input, shape index: {}]
  %s7 = inlined_call_operand.vmem [shape: f32[8,1], index: 7, kind: output, shape index: {}]
  %s8 = sld [smem:[#allocation0]]
  $region54: #{tpu_custom_call.1} parent=0
    _
  %s10 = ssub.s32 1, %s8
  %s11 = scalar_select 0, %s10, %s8
  %v12 = vstv %s6
  %13 = vst [vmem:[#allocation2] sm:$0x1] %v12
  $region1: #{tpu_custom_call.1} parent=0
    #allocation3 [shape = 'u8[4096]{0}', space=vmem, size = 0x1000, scoped, tag = 'input window, operand 0, single buffered']
    #allocation4 [shape = 's32[1]{0}', space=sflag, size = 0x4, scoped, tag = 'scoped memory for tpu_custom_call.1']
    #allocation5 [shape = 'u8[4096]{0}', space=vmem, size = 0x1000, scoped, tag = 'input window, operand 1, single buffered']
    #allocation6 [shape = 's32[1]{0}', space=sflag, size = 0x4, scoped, tag = 'scoped memory for tpu_custom_call.1']
    #allocation7 [shape = 'u8[12288]{0}', space=vmem, size = 0x3000, scoped, tag = 'input window, operand 2, single buffered']
    #allocation8 [shape = 'u8[4096]{0}', space=vmem, size = 0x1000, scoped, tag = 'input window, operand 3, single buffered']
    #allocation9 [shape = 's32[1]{0}', space=sflag, size = 0x4, scoped, tag = 'scoped memory for tpu_custom_call.1']
    %14 = vsyncpa [#allocation4], 0
    %15 = vsyncpa [#allocation6], 0
    %16 = vsyncpa [#allocation9], 0
    // Predicated region
    $region2: #{tpu_custom_call.1} parent=1 // pred_check
      _
    $region3: #{tpu_custom_call.1} parent=1 // pred_check_branch
      %18 = sbr.rel (0) target = $region5
    $region4: #{tpu_custom_call.1} parent=1 // pred_region
      %20 = vsyncadd [#allocation4], 0
      %s22 = sshll.u32 %s0, 4
      %s23 = int_to_ptr.hbm [resolvable:$true] %s22
      %s24 = sshll.u32 [#allocation3], 4
      %s25 = int_to_ptr.vmem [resolvable:$true] %s24
      %27 = dma.hbm_to_vmem [thread:$0]  %s23, 128, %s25, [#allocation4]
    $region5: #{tpu_custom_call.1} parent=1 // pred_fallthru
      _
    // Predicated region
    $region6: #{tpu_custom_call.1} parent=1 // pred_check
      _
    $region7: #{tpu_custom_call.1} parent=1 // pred_check_branch
      %29 = sbr.rel (0) target = $region9
    $region8: #{tpu_custom_call.1} parent=1 // pred_region
      %31 = vsyncadd [#allocation6], 0
      %s33 = sshll.u32 %s1, 4
      %s34 = int_to_ptr.hbm [resolvable:$true] %s33
      %s35 = sshll.u32 [#allocation5], 4
      %s36 = int_to_ptr.vmem [resolvable:$true] %s35
      %38 = dma.hbm_to_vmem [thread:$0]  %s34, 128, %s36, [#allocation6]
    $region9: #{tpu_custom_call.1} parent=1 // pred_fallthru
      _
    // Predicated region
    $region10: #{tpu_custom_call.1} parent=1 // pred_check
      _
    $region11: #{tpu_custom_call.1} parent=1 // pred_check_branch
      %40 = sbr.rel (0) target = $region13
    $region12: #{tpu_custom_call.1} parent=1 // pred_region
      %42 = vsyncadd [#allocation6], 0
      %s43 = sshll.u32 %s2, 4
      %s44 = int_to_ptr.hbm [resolvable:$true] %s43
      %s45 = sshll.u32 [#allocation7], 4
      %s46 = int_to_ptr.vmem [resolvable:$true] %s45
      %51 = dma.hbm_to_vmem [thread:$0]  %s44, 384, %s46, [#allocation6], 128, 128, 8
    $region13: #{tpu_custom_call.1} parent=1 // pred_fallthru
      _
    // Predicated region
    $region14: #{tpu_custom_call.1} parent=1 // pred_check
      _
    $region15: #{tpu_custom_call.1} parent=1 // pred_check_branch
      %53 = sbr.rel (0) target = $region17
    $region16: #{tpu_custom_call.1} parent=1 // pred_region
      %55 = vsyncadd [#allocation9], 0
      %s57 = sshll.u32 %s3, 4
      %s58 = int_to_ptr.hbm [resolvable:$true] %s57
      %s59 = sshll.u32 [#allocation8], 4
      %s60 = int_to_ptr.vmem [resolvable:$true] %s59
      %62 = dma.hbm_to_vmem [thread:$0]  %s58, 128, %s60, [#allocation9]
    $region17: #{tpu_custom_call.1} parent=1 // pred_fallthru
      _
    // Predicated region
    $region18: #{tpu_custom_call.1} parent=1 // pred_check
      _
    $region19: #{tpu_custom_call.1} parent=1 // pred_check_branch
      %64 = sbr.rel (0) target = $region21
    $region20: #{tpu_custom_call.1} parent=1 // pred_region
      _
    $region21: #{tpu_custom_call.1} parent=1 // pred_fallthru
      _
    // Predicated region
    $region22: #{tpu_custom_call.1} parent=1 // pred_check
      _
    $region23: #{tpu_custom_call.1} parent=1 // pred_check_branch
      %66 = sbr.rel (0) target = $region25
    $region24: #{tpu_custom_call.1} parent=1 // pred_region
      _
    $region25: #{tpu_custom_call.1} parent=1 // pred_fallthru
      _
    // Predicated region
    $region26: #{tpu_custom_call.1} parent=1 // pred_check
      _
    $region27: #{tpu_custom_call.1} parent=1 // pred_check_branch
      %68 = sbr.rel (0) target = $region29
    $region28: #{tpu_custom_call.1} parent=1 // pred_region
      _
    $region29: #{tpu_custom_call.1} parent=1 // pred_fallthru
      _
    // Predicated region
    $region30: #{tpu_custom_call.1} parent=1 // pred_check
      _
    $region31: #{tpu_custom_call.1} parent=1 // pred_check_branch
      %70 = sbr.rel (0) target = $region33
    $region32: #{tpu_custom_call.1} parent=1 // pred_region
      %72 = dma.done [#allocation4], 128
    $region33: #{tpu_custom_call.1} parent=1 // pred_fallthru
      _
    // Predicated region
    $region34: #{tpu_custom_call.1} parent=1 // pred_check
      _
    $region35: #{tpu_custom_call.1} parent=1 // pred_check_branch
      %74 = sbr.rel (0) target = $region37
    $region36: #{tpu_custom_call.1} parent=1 // pred_region
      %76 = dma.done [#allocation6], 128
    $region37: #{tpu_custom_call.1} parent=1 // pred_fallthru
      _
    // Predicated region
    $region38: #{tpu_custom_call.1} parent=1 // pred_check
      _
    $region39: #{tpu_custom_call.1} parent=1 // pred_check_branch
      %78 = sbr.rel (0) target = $region41
    $region40: #{tpu_custom_call.1} parent=1 // pred_region
      %80 = dma.done [#allocation6], 384
    $region41: #{tpu_custom_call.1} parent=1 // pred_fallthru
      _
    // Predicated region
    $region42: #{tpu_custom_call.1} parent=1 // pred_check
      _
    $region43: #{tpu_custom_call.1} parent=1 // pred_check_branch
      %82 = sbr.rel (0) target = $region45
    $region44: #{tpu_custom_call.1} parent=1 // pred_region
      %84 = dma.done [#allocation9], 128
    $region45: #{tpu_custom_call.1} parent=1 // pred_fallthru
      _
    %v85 = vld [vmem:[#allocation3] sm:$0xff]
    %v86 = vld [vmem:[#allocation7] sm:$0xff]
    %v87 = vld [vmem:[#allocation7 + $0x8] sm:$0xff]
    %v88 = vld [vmem:[#allocation7 + $0x10] sm:$0xff]
    %v89 = vld [vmem:[#allocation5] sm:$0xff]
    %v90 = vld [vmem:[#allocation8] sm:$0xff]
    %vm91 = vcmask 64512
    %v93 = vsel %vm91, %v89, 0
    %95 = vmatpush.msra.mxu0 0.0
    %96 = vmatpush.msra.mxu0 0.0
    %97 = vmatpush.msra.mxu0 0.0
    %98 = vmatpush.msra.mxu0 0.0
    %99 = vmatpush.msra.mxu0 0.0
    %100 = vmatpush.msra.mxu0 0.0
    %101 = vmatpush.msra.mxu0 0.0
    %102 = vmatpush.msra.mxu0 0.0
    %103 = vmatpush.msra.mxu0 0.0
    %104 = vmatpush.msra.mxu0 0.0
    %105 = vmatpush.msra.mxu0 0.0
    %106 = vmatpush.msra.mxu0 0.0
    %107 = vmatpush.msra.mxu0 0.0
    %108 = vmatpush.msra.mxu0 0.0
    %109 = vmatpush.msra.mxu0 0.0
    %110 = vmatpush.msra.mxu0 %v90
    %111 = vmatmul.f32.gmra.mxu0 %v93
    %v112 = vpop.f32.mrf.mxu0
    %v113 = vadd.f32 0.0, %v112
    %114 = vdwg.mxu0
    %vm115 = vcmask 195584
    %v117 = vsel %vm115, %v85, 0
    %119 = vmatpush.msra.mxu0 0.0
    %120 = vmatpush.msra.mxu0 0.0
    %121 = vmatpush.msra.mxu0 0.0
    %122 = vmatpush.msra.mxu0 0.0
    %123 = vmatpush.msra.mxu0 0.0
    %124 = vmatpush.msra.mxu0 0.0
    %125 = vmatpush.msra.mxu0 0.0
    %126 = vmatpush.msra.mxu0 0.0
    %127 = vmatpush.msra.mxu0 0.0
    %128 = vmatpush.msra.mxu0 0.0
    %129 = vmatpush.msra.mxu0 0.0
    %130 = vmatpush.msra.mxu0 0.0
    %131 = vmatpush.msra.mxu0 0.0
    %132 = vmatpush.msra.mxu0 %v88
    %133 = vmatpush.msra.mxu0 %v87
    %134 = vmatpush.msra.mxu0 %v86
    %135 = vmatmul.f32.gmra.mxu0 %v117
    %v136 = vpop.f32.mrf.mxu0
    %v137 = vadd.f32 %v113, %v136
    %138 = vdwg.mxu0
    %v139 = vld [vmem:[%s4] sm:$0x1]
    %v141 = vperm.slane %v139, 0
    %v143 = vadd.f32 %v137, %v141
    %v144 = vmax.f32 %v143, 0.0
    %v145 = vld [vmem:[%s5] sm:$0x1]
    %v147 = vperm.slane %v145, 0
    %v149 = vmul.f32 %v144, %v147
    %vm150 = vcmask 261120
    %v151 = vsel %vm150, %v149, 0.0
    %152 = vadd.xlane.f32.xlu0 %v151
    %v153 = vpop.xlane.xlu0 %152
    %v154 = vld [vmem:[#allocation2] sm:$0x1]
    %v156 = vperm.slane %v154, 0
    %v158 = vadd.f32 %v153, %v156
    %vm159 = vcmask 7168
    %160 = vst.msk [vmem:[%s7] sm:$0xff] %vm159, %v158
    // Predicated region
    $region46: #{tpu_custom_call.1} parent=1 // pred_check
      _
    $region47: #{tpu_custom_call.1} parent=1 // pred_check_branch
      %162 = sbr.rel (0) target = $region49
    $region48: #{tpu_custom_call.1} parent=1 // pred_region
      _
    $region49: #{tpu_custom_call.1} parent=1 // pred_fallthru
      _
    // Predicated region
    $region50: #{tpu_custom_call.1} parent=1 // pred_check
      _
    $region51: #{tpu_custom_call.1} parent=1 // pred_check_branch
      %164 = sbr.rel (0) target = $region53
    $region52: #{tpu_custom_call.1} parent=1 // pred_region
      _
    $region53: #{tpu_custom_call.1} parent=1 // pred_fallthru
      _
    %165 = vsyncpa [#allocation4], 1
    %166 = vsyncpa [#allocation6], 1
    %167 = vsyncpa [#allocation9], 1

</llo_original>
